<compile_context>
chip_gen: v6e
topology: v6e:2x2x1
jax: 0.10.0
libtpu: 0.0.40
codegen_flags: <defaults>
</compile_context>

<pallas_src>
import functools
import math

import jax
import jax.numpy as jnp
from jax import lax
from jax.experimental import pallas as pl
from jax.experimental.pallas import tpu as pltpu


def _meta_mamba_kernel(emb_ref, x_ref, w_in_t_ref, conv_w_ref, conv_b_ref,
                       w_dtbc_ref, dt_bias_ref, a_neg_t_ref, d_vec_ref,
                       w_out_t_ref, o_ref):
    seq = x_ref.shape[1]
    lp = seq + 1
    d_conv, d_inner = conv_w_ref.shape
    d_state = a_neg_t_ref.shape[0]
    f32 = jnp.float32

    # ---- token assembly: [layer_embedding ; x] (value-level, no scratch) -------
    xcat = jnp.concatenate([emb_ref[0], x_ref[0]], axis=0)            # (lp, d_model)

    # ---- in_proj: one dense (lp, d_model) @ (d_model, 2*d_inner) MXU matmul ----
    xz = jnp.dot(xcat, w_in_t_ref[...], preferred_element_type=f32)   # (lp, 2*d_inner)
    x_in = xz[:, :d_inner]                                            # (lp, d_inner)
    z = xz[1:, d_inner:]                                              # (seq, d_inner)

    # ---- causal depthwise conv (VPU broadcast-mul on vreg values) --------------
    xpad = jnp.concatenate([jnp.zeros((d_conv - 1, d_inner), f32), x_in], axis=0)
    cw = conv_w_ref[...]                                              # (d_conv, d_inner)
    acc = jnp.zeros((lp, d_inner), f32)
    for k in range(d_conv):                                           # static unroll (d_conv=4)
        acc = acc + cw[k:k + 1, :] * xpad[k:k + lp, :]
    acc = acc + conv_b_ref[...]
    u = acc * (1.0 / (1.0 + jnp.exp(-acc)))                           # SiLU

    # ---- fused (folded-dt | B | C) projection: single MXU matmul ---------------
    proj = jnp.dot(u, w_dtbc_ref[...], preferred_element_type=f32)    # (lp, d_inner+2*d_state)
    dt_lin = proj[:, :d_inner] + dt_bias_ref[...]
    dt = jnp.maximum(dt_lin, 0.0) + jnp.log(1.0 + jnp.exp(-jnp.abs(dt_lin)))  # softplus
    b_all = proj[:, d_inner:d_inner + d_state]                        # (lp, d_state)
    c_all = proj[:, d_inner + d_state:]                               # (lp, d_state)

    # ---- batched precompute: everything off the serial h-chain -----------------
    a_t = a_neg_t_ref[...]                                            # (d_state, d_inner) = -exp(A_log).T
    dtu = dt * u                                                      # (lp, d_inner)
    da_all = jnp.exp(dt[:, None, :] * a_t[None, :, :])                # (lp, d_state, d_inner)
    dbu_all = b_all[:, :, None] * dtu[:, None, :]                     # (lp, d_state, d_inner)

    # ---- minimal serial recurrence: h_t = da_t * h_{t-1} + dBu_t ---------------
    h = jnp.zeros((d_state, d_inner), f32)
    hs = []
    for t in range(lp):                                               # static unroll, lp = 9
        h = da_all[t] * h + dbu_all[t]
        if t >= 1:  # token 0 (the layer embedding) is dropped by the module output
            hs.append(h)
    h_hist = jnp.stack(hs, axis=0)                                    # (seq, d_state, d_inner)

    # ---- batched readout: y_t = <h_t, C_t> + D * u_t ---------------------------
    y = (jnp.sum(h_hist * c_all[1:, :, None], axis=1)
         + d_vec_ref[...] * u[1:, :])                                 # (seq, d_inner)

    # ---- gate with SiLU(z) and out_proj ----------------------------------------
    gated = y * (z * (1.0 / (1.0 + jnp.exp(-z))))
    o_ref[0] = jnp.dot(gated, w_out_t_ref[...],
                       preferred_element_type=f32).astype(o_ref.dtype)


def prepare_meta_mamba_params(params):
    """One-time parameter re-layout, hoisted out of the per-call path."""
    emb_w = params["emb"]                    # (num_layers, d_model)
    in_proj_w = params["in_proj_w"]          # (2*d_inner, d_model)
    conv_w = params["conv_w"]                # (d_inner, 1, d_conv)
    conv_b = params["conv_b"]                # (d_inner,)
    x_proj_w = params["x_proj_w"]            # (dt_rank + 2*d_state, d_inner)
    dt_proj_w = params["dt_proj_w"]          # (d_inner, dt_rank)
    dt_proj_b = params["dt_proj_b"]          # (d_inner,)
    a_log = params["A_log"]                  # (d_inner, d_state)
    d_vec = params["D"]                      # (d_inner,)
    out_proj_w = params["out_proj_w"]        # (d_model, d_inner)

    d_inner, _, d_conv = conv_w.shape
    d_state = a_log.shape[1]
    dt_rank = dt_proj_w.shape[1]
    num_layers, d_model = emb_w.shape

    w_x_dt = x_proj_w[:dt_rank, :]           # (dt_rank, d_inner)
    w_x_bc = x_proj_w[dt_rank:, :]           # (2*d_state, d_inner)
    # Fold the degenerate (K=dt_rank) projection into a dense matrix, then fuse it
    # with the (transposed) B/C projection into a single MXU weight.
    w_dt_fold = jnp.dot(w_x_dt.T, dt_proj_w.T, precision=lax.Precision.HIGHEST)
    w_dtbc = jnp.concatenate([w_dt_fold, w_x_bc.T], axis=1)   # (d_inner, d_inner+2*d_state)

    arrays = {
        "emb3": emb_w.reshape(num_layers, 1, d_model),
        "w_in_t": in_proj_w.T,                                 # (d_model, 2*d_inner)
        "conv_w2": conv_w[:, 0, :].T,                          # (d_conv, d_inner)
        "conv_b2": conv_b.reshape(1, d_inner),
        "w_dtbc": w_dtbc,
        "dt_b2": dt_proj_b.reshape(1, d_inner),
        "a_neg_t": -jnp.exp(a_log).T,                          # (d_state, d_inner)
        "d2": d_vec.reshape(1, d_inner),
        "w_out_t": out_proj_w.T,                               # (d_inner, d_model)
    }
    arrays = {k: jax.block_until_ready(v) for k, v in arrays.items()}
    dims = dict(num_layers=num_layers, d_model=d_model, d_inner=d_inner,
                d_state=d_state, d_conv=d_conv, dt_rank=dt_rank)
    return {"arrays": arrays, "dims": dims}


@functools.lru_cache(maxsize=None)
def _build_call(seq, d_model, d_inner, d_state, d_conv, layer_idx, dtype_name):
    lp = seq + 1

    def fullspec(shape):
        return pl.BlockSpec(shape, lambda i: (0,) * len(shape))

    in_specs = [
        # layer-embedding row: static block index (layer_idx is a Python int)
        pl.BlockSpec((1, 1, d_model), lambda i: (layer_idx, 0, 0)),
        fullspec((1, seq, d_model)),
        fullspec((d_model, 2 * d_inner)),
        fullspec((d_conv, d_inner)),
        fullspec((1, d_inner)),
        fullspec((d_inner, d_inner + 2 * d_state)),
        fullspec((1, d_inner)),
        fullspec((d_state, d_inner)),
        fullspec((1, d_inner)),
        fullspec((d_inner, d_model)),
    ]

    flops = int(2 * lp * d_model * 2 * d_inner                     # in_proj
                + 2 * lp * d_conv * d_inner                        # depthwise conv
                + 2 * lp * d_inner * (d_inner + 2 * d_state)       # fused dt/B/C proj
                + 8 * lp * d_state * d_inner                       # scan + readout
                + 2 * seq * d_inner * d_model                      # out_proj
                + 8 * lp * d_inner)                                # activations/gate
    trans = int(3 * lp * d_inner + lp * d_state * d_inner + seq * d_inner)
    bytes_accessed = int(4 * (d_model + seq * d_model
                              + d_model * 2 * d_inner + d_conv * d_inner + d_inner
                              + d_inner * (d_inner + 2 * d_state) + d_inner
                              + d_state * d_inner + d_inner + d_inner * d_model
                              + seq * d_model))

    call = pl.pallas_call(
        _meta_mamba_kernel,
        out_shape=jax.ShapeDtypeStruct((1, seq, d_model), jnp.dtype(dtype_name)),
        grid=(1,),
        in_specs=in_specs,
        out_specs=fullspec((1, seq, d_model)),
        compiler_params=pltpu.CompilerParams(dimension_semantics=("arbitrary",)),
        cost_estimate=pl.CostEstimate(flops=flops, transcendentals=trans,
                                      bytes_accessed=bytes_accessed),
    )
    return jax.jit(call)


def meta_mamba_history(x, layer_idx, prepared):
    """x: (1, L, d_model) float32; layer_idx: Python int; prepared: prepare_meta_mamba_params(...)."""
    dims = prepared["dims"]
    arr = prepared["arrays"]
    b, seq, d_model = x.shape
    assert b == 1, "module's torch.cat with a (1,1,d_model) embedding implies batch=1"
    assert d_model == dims["d_model"]

    call = _build_call(seq, d_model, dims["d_inner"], dims["d_state"],
                       dims["d_conv"], int(layer_idx), str(x.dtype))
    return call(arr["emb3"], x, arr["w_in_t"], arr["conv_w2"], arr["conv_b2"],
                arr["w_dtbc"], arr["dt_b2"], arr["a_neg_t"], arr["d2"], arr["w_out_t"])


def _reference(x, layer_idx, p):
    hp = lax.Precision.HIGHEST
    d_inner, _, d_conv = p["conv_w"].shape
    d_state = p["A_log"].shape[1]
    dt_rank = p["dt_proj_w"].shape[1]

    emb = p["emb"][layer_idx][None, None, :]
    xc = jnp.concatenate([emb, x], axis=1)
    lp = xc.shape[1]
    xz = jnp.einsum("bld,ed->ble", xc, p["in_proj_w"], precision=hp)
    x_in, z = xz[..., :d_inner], xz[..., d_inner:]

    w = p["conv_w"][:, 0, :]                                   # (d_inner, d_conv)
    xp = jnp.pad(x_in, ((0, 0), (d_conv - 1, 0), (0, 0)))
    conv = jnp.zeros_like(x_in)
    for k in range(d_conv):
        conv = conv + xp[:, k:k + lp, :] * w[:, k][None, None, :]
    conv = conv + p["conv_b"][None, None, :]
    u = conv * jax.nn.sigmoid(conv)

    x_dbl = jnp.einsum("bld,ed->ble", u, p["x_proj_w"], precision=hp)
    dt_in = x_dbl[..., :dt_rank]
    Bm = x_dbl[..., dt_rank:dt_rank + d_state]
    Cm = x_dbl[..., dt_rank + d_state:]
    dt = jax.nn.softplus(
        jnp.einsum("blr,er->ble", dt_in, p["dt_proj_w"], precision=hp)
        + p["dt_proj_b"][None, None, :])

    A = -jnp.exp(p["A_log"])
    D = p["D"]
    h = jnp.zeros((1, d_inner, d_state), jnp.float32)
    ys = []
    for t in range(lp):
        dt_t, u_t = dt[:, t, :], u[:, t, :]
        B_t, C_t = Bm[:, t, :], Cm[:, t, :]
        h = jnp.exp(dt_t[..., None] * A[None]) * h + (dt_t * u_t)[..., None] * B_t[:, None, :]
        ys.append(jnp.sum(h * C_t[:, None, :], axis=-1) + D[None, :] * u_t)
    y = jnp.stack(ys, axis=1)
    y = y * (z * jax.nn.sigmoid(z))
    out = jnp.einsum("ble,de->bld", y, p["out_proj_w"], precision=hp)
    return out[:, 1:, :]


if __name__ == "__main__":
    num_layers, d_model, d_state, d_conv, expand = 4, 32, 16, 4, 4
    d_inner = expand * d_model                  # 128
    dt_rank = max(1, math.ceil(d_model / 16))   # 2
    seq_len = 8
    layer_idx = 2

    keys = jax.random.split(jax.random.PRNGKey(0), 10)
    s_dm = 1.0 / math.sqrt(d_model)
    s_di = 1.0 / math.sqrt(d_inner)
    s_dr = 1.0 / math.sqrt(dt_rank)
    params = {
        "emb": 0.5 * jax.random.normal(keys[0], (num_layers, d_model), jnp.float32),
        "in_proj_w": jax.random.uniform(keys[1], (2 * d_inner, d_model), jnp.float32, -s_dm, s_dm),
        "conv_w": jax.random.uniform(keys[2], (d_inner, 1, d_conv), jnp.float32, -0.5, 0.5),
        "conv_b": jax.random.uniform(keys[3], (d_inner,), jnp.float32, -0.1, 0.1),
        "x_proj_w": jax.random.uniform(keys[4], (dt_rank + 2 * d_state, d_inner), jnp.float32, -s_di, s_di),
        "dt_proj_w": jax.random.uniform(keys[5], (d_inner, dt_rank), jnp.float32, -s_dr, s_dr),
        "dt_proj_b": jax.random.uniform(keys[6], (d_inner,), jnp.float32, -4.0, -1.0),
        "A_log": jnp.log(jnp.tile(jnp.arange(1, d_state + 1, dtype=jnp.float32)[None, :], (d_inner, 1))),
        "D": jnp.ones((d_inner,), jnp.float32),
        "out_proj_w": jax.random.uniform(keys[7], (d_model, d_inner), jnp.float32, -s_di, s_di),
    }
    x = jax.random.normal(keys[8], (1, seq_len, d_model), jnp.float32)

    prepared = prepare_meta_mamba_params(params)   # one-time init (not per call)
    out = meta_mamba_history(x, layer_idx, prepared)
    out = jax.block_until_ready(out)
    ref = _reference(x, layer_idx, params)

    assert out.shape == x.shape, (out.shape, x.shape)
    max_err = float(jnp.max(jnp.abs(out - ref)))
    assert jnp.allclose(out, ref, atol=2e-4, rtol=2e-4), max_err
    print("KERNEL_OK")
</pallas_src>

<mosaic_0001>
module attributes {stable_mosaic.version = 11 : i64} {
  func.func @_meta_mamba_kernel(%arg0: i32, %arg1: memref<1x1x32xf32, #tpu.memory_space<vmem>>, %arg2: memref<1x8x32xf32, #tpu.memory_space<vmem>>, %arg3: memref<32x256xf32, #tpu.memory_space<vmem>>, %arg4: memref<4x128xf32, #tpu.memory_space<vmem>>, %arg5: memref<1x128xf32, #tpu.memory_space<vmem>>, %arg6: memref<128x160xf32, #tpu.memory_space<vmem>>, %arg7: memref<1x128xf32, #tpu.memory_space<vmem>>, %arg8: memref<16x128xf32, #tpu.memory_space<vmem>>, %arg9: memref<1x128xf32, #tpu.memory_space<vmem>>, %arg10: memref<128x32xf32, #tpu.memory_space<vmem>>, %arg11: memref<1x8x32xf32, #tpu.memory_space<vmem>>) attributes {dimension_semantics = [#tpu.dimension_semantics<arbitrary>], iteration_bounds = array<i64: 1>, scalar_prefetch = 0 : i64, scratch_operands = 0 : i64, tpu.core_type = #tpu.core_type<tc>, window_params = [{transform_indices = @transform_0, window_bounds = array<i64: 1, 1, 32>}, {pipeline_mode = #tpu.pipeline_mode<synchronous>, transform_indices = @transform_1, window_bounds = array<i64: 1, 8, 32>}, {pipeline_mode = #tpu.pipeline_mode<synchronous>, transform_indices = @transform_2, window_bounds = array<i64: 32, 256>}, {pipeline_mode = #tpu.pipeline_mode<synchronous>, transform_indices = @transform_3, window_bounds = array<i64: 4, 128>}, {pipeline_mode = #tpu.pipeline_mode<synchronous>, transform_indices = @transform_4, window_bounds = array<i64: 1, 128>}, {pipeline_mode = #tpu.pipeline_mode<synchronous>, transform_indices = @transform_5, window_bounds = array<i64: 128, 160>}, {pipeline_mode = #tpu.pipeline_mode<synchronous>, transform_indices = @transform_6, window_bounds = array<i64: 1, 128>}, {pipeline_mode = #tpu.pipeline_mode<synchronous>, transform_indices = @transform_7, window_bounds = array<i64: 16, 128>}, {pipeline_mode = #tpu.pipeline_mode<synchronous>, transform_indices = @transform_8, window_bounds = array<i64: 1, 128>}, {pipeline_mode = #tpu.pipeline_mode<synchronous>, transform_indices = @transform_9, window_bounds = array<i64: 128, 32>}, {pipeline_mode = #tpu.pipeline_mode<synchronous>, transform_indices = @transform_10, window_bounds = array<i64: 1, 8, 32>}]} {
    %c0 = arith.constant 0 : index
    %c0_0 = arith.constant 0 : index
    %c0_1 = arith.constant 0 : index
    %0 = vector.load %arg1[%c0, %c0_0, %c0_1] : memref<1x1x32xf32, #tpu.memory_space<vmem>>, vector<1x1x32xf32>
    %1 = vector.shape_cast %0 : vector<1x1x32xf32> to vector<1x32xf32>
    %c0_2 = arith.constant 0 : index
    %c0_3 = arith.constant 0 : index
    %c0_4 = arith.constant 0 : index
    %2 = vector.load %arg2[%c0_2, %c0_3, %c0_4] : memref<1x8x32xf32, #tpu.memory_space<vmem>>, vector<1x8x32xf32>
    %3 = vector.shape_cast %2 : vector<1x8x32xf32> to vector<8x32xf32>
    %4 = tpu.concatenate %1, %3 in 0 : vector<1x32xf32>, vector<8x32xf32> -> vector<9x32xf32>
    %c0_5 = arith.constant 0 : index
    %c0_6 = arith.constant 0 : index
    %5 = vector.load %arg3[%c0_5, %c0_6] : memref<32x256xf32, #tpu.memory_space<vmem>>, vector<32x256xf32>
    %cst = arith.constant dense<0.000000e+00> : vector<9x256xf32>
    %6 = tpu.matmul %4, %5, %cst {dimension_numbers = #tpu.dot_dimension_numbers<[1], [0], [0], [1], [0, 0, 1, 1], [], []>} : vector<9x32xf32>, vector<32x256xf32>, vector<9x256xf32> -> vector<9x256xf32>
    %7 = vector.extract_strided_slice %6 {offsets = [0, 0], sizes = [9, 128], strides = [1, 1]} : vector<9x256xf32> to vector<9x128xf32>
    %8 = vector.extract_strided_slice %6 {offsets = [1, 128], sizes = [8, 128], strides = [1, 1]} : vector<9x256xf32> to vector<8x128xf32>
    %cst_7 = arith.constant 0.000000e+00 : f32
    %9 = vector.broadcast %cst_7 : f32 to vector<3x128xf32>
    %10 = tpu.concatenate %9, %7 in 0 : vector<3x128xf32>, vector<9x128xf32> -> vector<12x128xf32>
    %c0_8 = arith.constant 0 : index
    %c0_9 = arith.constant 0 : index
    %11 = vector.load %arg4[%c0_8, %c0_9] : memref<4x128xf32, #tpu.memory_space<vmem>>, vector<4x128xf32>
    %cst_10 = arith.constant 0.000000e+00 : f32
    %12 = vector.broadcast %cst_10 : f32 to vector<9x128xf32>
    %13 = vector.extract_strided_slice %11 {offsets = [0, 0], sizes = [1, 128], strides = [1, 1]} : vector<4x128xf32> to vector<1x128xf32>
    %14 = vector.extract_strided_slice %10 {offsets = [0, 0], sizes = [9, 128], strides = [1, 1]} : vector<12x128xf32> to vector<9x128xf32>
    %15 = vector.broadcast %13 : vector<1x128xf32> to vector<9x128xf32>
    %16 = arith.mulf %15, %14 : vector<9x128xf32>
    %17 = arith.addf %12, %16 : vector<9x128xf32>
    %18 = vector.extract_strided_slice %11 {offsets = [1, 0], sizes = [1, 128], strides = [1, 1]} : vector<4x128xf32> to vector<1x128xf32>
    %19 = vector.extract_strided_slice %10 {offsets = [1, 0], sizes = [9, 128], strides = [1, 1]} : vector<12x128xf32> to vector<9x128xf32>
    %20 = vector.broadcast %18 : vector<1x128xf32> to vector<9x128xf32>
    %21 = arith.mulf %20, %19 : vector<9x128xf32>
    %22 = arith.addf %17, %21 : vector<9x128xf32>
    %23 = vector.extract_strided_slice %11 {offsets = [2, 0], sizes = [1, 128], strides = [1, 1]} : vector<4x128xf32> to vector<1x128xf32>
    %24 = vector.extract_strided_slice %10 {offsets = [2, 0], sizes = [9, 128], strides = [1, 1]} : vector<12x128xf32> to vector<9x128xf32>
    %25 = vector.broadcast %23 : vector<1x128xf32> to vector<9x128xf32>
    %26 = arith.mulf %25, %24 : vector<9x128xf32>
    %27 = arith.addf %22, %26 : vector<9x128xf32>
    %28 = vector.extract_strided_slice %11 {offsets = [3, 0], sizes = [1, 128], strides = [1, 1]} : vector<4x128xf32> to vector<1x128xf32>
    %29 = vector.extract_strided_slice %10 {offsets = [3, 0], sizes = [9, 128], strides = [1, 1]} : vector<12x128xf32> to vector<9x128xf32>
    %30 = vector.broadcast %28 : vector<1x128xf32> to vector<9x128xf32>
    %31 = arith.mulf %30, %29 : vector<9x128xf32>
    %32 = arith.addf %27, %31 : vector<9x128xf32>
    %c0_11 = arith.constant 0 : index
    %c0_12 = arith.constant 0 : index
    %33 = vector.load %arg5[%c0_11, %c0_12] : memref<1x128xf32, #tpu.memory_space<vmem>>, vector<1x128xf32>
    %34 = vector.broadcast %33 : vector<1x128xf32> to vector<9x128xf32>
    %35 = arith.addf %32, %34 : vector<9x128xf32>
    %cst_13 = arith.constant 0.000000e+00 : f32
    %36 = vector.broadcast %cst_13 : f32 to vector<9x128xf32>
    %37 = arith.subf %36, %35 : vector<9x128xf32>
    %38 = math.exp %37 : vector<9x128xf32>
    %cst_14 = arith.constant 1.000000e+00 : f32
    %39 = vector.broadcast %cst_14 : f32 to vector<9x128xf32>
    %40 = arith.addf %39, %38 : vector<9x128xf32>
    %cst_15 = arith.constant 1.000000e+00 : f32
    %41 = vector.broadcast %cst_15 : f32 to vector<9x128xf32>
    %42 = arith.divf %41, %40 : vector<9x128xf32>
    %43 = arith.mulf %35, %42 : vector<9x128xf32>
    %c0_16 = arith.constant 0 : index
    %c0_17 = arith.constant 0 : index
    %44 = vector.load %arg6[%c0_16, %c0_17] : memref<128x160xf32, #tpu.memory_space<vmem>>, vector<128x160xf32>
    %cst_18 = arith.constant dense<0.000000e+00> : vector<9x160xf32>
    %45 = tpu.matmul %43, %44, %cst_18 {dimension_numbers = #tpu.dot_dimension_numbers<[1], [0], [0], [1], [0, 0, 1, 1], [], []>} : vector<9x128xf32>, vector<128x160xf32>, vector<9x160xf32> -> vector<9x160xf32>
    %46 = vector.extract_strided_slice %45 {offsets = [0, 0], sizes = [9, 128], strides = [1, 1]} : vector<9x160xf32> to vector<9x128xf32>
    %c0_19 = arith.constant 0 : index
    %c0_20 = arith.constant 0 : index
    %47 = vector.load %arg7[%c0_19, %c0_20] : memref<1x128xf32, #tpu.memory_space<vmem>>, vector<1x128xf32>
    %48 = vector.broadcast %47 : vector<1x128xf32> to vector<9x128xf32>
    %49 = arith.addf %46, %48 : vector<9x128xf32>
    %cst_21 = arith.constant 0.000000e+00 : f32
    %50 = vector.broadcast %cst_21 : f32 to vector<9x128xf32>
    %51 = arith.maximumf %49, %50 : vector<9x128xf32>
    %52 = math.absf %49 : vector<9x128xf32>
    %cst_22 = arith.constant 0.000000e+00 : f32
    %53 = vector.broadcast %cst_22 : f32 to vector<9x128xf32>
    %54 = arith.subf %53, %52 : vector<9x128xf32>
    %55 = math.exp %54 : vector<9x128xf32>
    %cst_23 = arith.constant 1.000000e+00 : f32
    %56 = vector.broadcast %cst_23 : f32 to vector<9x128xf32>
    %57 = arith.addf %56, %55 : vector<9x128xf32>
    %58 = math.log %57 : vector<9x128xf32>
    %59 = arith.addf %51, %58 : vector<9x128xf32>
    %60 = vector.extract_strided_slice %45 {offsets = [0, 128], sizes = [9, 16], strides = [1, 1]} : vector<9x160xf32> to vector<9x16xf32>
    %61 = vector.extract_strided_slice %45 {offsets = [0, 144], sizes = [9, 16], strides = [1, 1]} : vector<9x160xf32> to vector<9x16xf32>
    %c0_24 = arith.constant 0 : index
    %c0_25 = arith.constant 0 : index
    %62 = vector.load %arg8[%c0_24, %c0_25] : memref<16x128xf32, #tpu.memory_space<vmem>>, vector<16x128xf32>
    %63 = arith.mulf %59, %43 : vector<9x128xf32>
    %64 = vector.shape_cast %59 : vector<9x128xf32> to vector<9x1x128xf32>
    %65 = vector.shape_cast %62 : vector<16x128xf32> to vector<1x16x128xf32>
    %66 = vector.broadcast %64 : vector<9x1x128xf32> to vector<9x16x128xf32>
    %67 = vector.broadcast %65 : vector<1x16x128xf32> to vector<9x16x128xf32>
    %68 = arith.mulf %66, %67 : vector<9x16x128xf32>
    %69 = math.exp %68 : vector<9x16x128xf32>
    %70 = vector.shape_cast %60 : vector<9x16xf32> to vector<9x16x1xf32>
    %71 = vector.shape_cast %63 : vector<9x128xf32> to vector<9x1x128xf32>
    %72 = vector.broadcast %70 : vector<9x16x1xf32> to vector<9x16x128xf32>
    %73 = vector.broadcast %71 : vector<9x1x128xf32> to vector<9x16x128xf32>
    %74 = arith.mulf %72, %73 : vector<9x16x128xf32>
    %cst_26 = arith.constant 0.000000e+00 : f32
    %75 = vector.broadcast %cst_26 : f32 to vector<16x128xf32>
    %76 = vector.extract_strided_slice %69 {offsets = [0, 0, 0], sizes = [1, 16, 128], strides = [1, 1, 1]} : vector<9x16x128xf32> to vector<1x16x128xf32>
    %77 = vector.shape_cast %76 : vector<1x16x128xf32> to vector<16x128xf32>
    %78 = arith.mulf %77, %75 : vector<16x128xf32>
    %79 = vector.extract_strided_slice %74 {offsets = [0, 0, 0], sizes = [1, 16, 128], strides = [1, 1, 1]} : vector<9x16x128xf32> to vector<1x16x128xf32>
    %80 = vector.shape_cast %79 : vector<1x16x128xf32> to vector<16x128xf32>
    %81 = arith.addf %78, %80 : vector<16x128xf32>
    %82 = vector.extract_strided_slice %69 {offsets = [1, 0, 0], sizes = [1, 16, 128], strides = [1, 1, 1]} : vector<9x16x128xf32> to vector<1x16x128xf32>
    %83 = vector.shape_cast %82 : vector<1x16x128xf32> to vector<16x128xf32>
    %84 = arith.mulf %83, %81 : vector<16x128xf32>
    %85 = vector.extract_strided_slice %74 {offsets = [1, 0, 0], sizes = [1, 16, 128], strides = [1, 1, 1]} : vector<9x16x128xf32> to vector<1x16x128xf32>
    %86 = vector.shape_cast %85 : vector<1x16x128xf32> to vector<16x128xf32>
    %87 = arith.addf %84, %86 : vector<16x128xf32>
    %88 = vector.extract_strided_slice %69 {offsets = [2, 0, 0], sizes = [1, 16, 128], strides = [1, 1, 1]} : vector<9x16x128xf32> to vector<1x16x128xf32>
    %89 = vector.shape_cast %88 : vector<1x16x128xf32> to vector<16x128xf32>
    %90 = arith.mulf %89, %87 : vector<16x128xf32>
    %91 = vector.extract_strided_slice %74 {offsets = [2, 0, 0], sizes = [1, 16, 128], strides = [1, 1, 1]} : vector<9x16x128xf32> to vector<1x16x128xf32>
    %92 = vector.shape_cast %91 : vector<1x16x128xf32> to vector<16x128xf32>
    %93 = arith.addf %90, %92 : vector<16x128xf32>
    %94 = vector.extract_strided_slice %69 {offsets = [3, 0, 0], sizes = [1, 16, 128], strides = [1, 1, 1]} : vector<9x16x128xf32> to vector<1x16x128xf32>
    %95 = vector.shape_cast %94 : vector<1x16x128xf32> to vector<16x128xf32>
    %96 = arith.mulf %95, %93 : vector<16x128xf32>
    %97 = vector.extract_strided_slice %74 {offsets = [3, 0, 0], sizes = [1, 16, 128], strides = [1, 1, 1]} : vector<9x16x128xf32> to vector<1x16x128xf32>
    %98 = vector.shape_cast %97 : vector<1x16x128xf32> to vector<16x128xf32>
    %99 = arith.addf %96, %98 : vector<16x128xf32>
    %100 = vector.extract_strided_slice %69 {offsets = [4, 0, 0], sizes = [1, 16, 128], strides = [1, 1, 1]} : vector<9x16x128xf32> to vector<1x16x128xf32>
    %101 = vector.shape_cast %100 : vector<1x16x128xf32> to vector<16x128xf32>
    %102 = arith.mulf %101, %99 : vector<16x128xf32>
    %103 = vector.extract_strided_slice %74 {offsets = [4, 0, 0], sizes = [1, 16, 128], strides = [1, 1, 1]} : vector<9x16x128xf32> to vector<1x16x128xf32>
    %104 = vector.shape_cast %103 : vector<1x16x128xf32> to vector<16x128xf32>
    %105 = arith.addf %102, %104 : vector<16x128xf32>
    %106 = vector.extract_strided_slice %69 {offsets = [5, 0, 0], sizes = [1, 16, 128], strides = [1, 1, 1]} : vector<9x16x128xf32> to vector<1x16x128xf32>
    %107 = vector.shape_cast %106 : vector<1x16x128xf32> to vector<16x128xf32>
    %108 = arith.mulf %107, %105 : vector<16x128xf32>
    %109 = vector.extract_strided_slice %74 {offsets = [5, 0, 0], sizes = [1, 16, 128], strides = [1, 1, 1]} : vector<9x16x128xf32> to vector<1x16x128xf32>
    %110 = vector.shape_cast %109 : vector<1x16x128xf32> to vector<16x128xf32>
    %111 = arith.addf %108, %110 : vector<16x128xf32>
    %112 = vector.extract_strided_slice %69 {offsets = [6, 0, 0], sizes = [1, 16, 128], strides = [1, 1, 1]} : vector<9x16x128xf32> to vector<1x16x128xf32>
    %113 = vector.shape_cast %112 : vector<1x16x128xf32> to vector<16x128xf32>
    %114 = arith.mulf %113, %111 : vector<16x128xf32>
    %115 = vector.extract_strided_slice %74 {offsets = [6, 0, 0], sizes = [1, 16, 128], strides = [1, 1, 1]} : vector<9x16x128xf32> to vector<1x16x128xf32>
    %116 = vector.shape_cast %115 : vector<1x16x128xf32> to vector<16x128xf32>
    %117 = arith.addf %114, %116 : vector<16x128xf32>
    %118 = vector.extract_strided_slice %69 {offsets = [7, 0, 0], sizes = [1, 16, 128], strides = [1, 1, 1]} : vector<9x16x128xf32> to vector<1x16x128xf32>
    %119 = vector.shape_cast %118 : vector<1x16x128xf32> to vector<16x128xf32>
    %120 = arith.mulf %119, %117 : vector<16x128xf32>
    %121 = vector.extract_strided_slice %74 {offsets = [7, 0, 0], sizes = [1, 16, 128], strides = [1, 1, 1]} : vector<9x16x128xf32> to vector<1x16x128xf32>
    %122 = vector.shape_cast %121 : vector<1x16x128xf32> to vector<16x128xf32>
    %123 = arith.addf %120, %122 : vector<16x128xf32>
    %124 = vector.extract_strided_slice %69 {offsets = [8, 0, 0], sizes = [1, 16, 128], strides = [1, 1, 1]} : vector<9x16x128xf32> to vector<1x16x128xf32>
    %125 = vector.shape_cast %124 : vector<1x16x128xf32> to vector<16x128xf32>
    %126 = arith.mulf %125, %123 : vector<16x128xf32>
    %127 = vector.extract_strided_slice %74 {offsets = [8, 0, 0], sizes = [1, 16, 128], strides = [1, 1, 1]} : vector<9x16x128xf32> to vector<1x16x128xf32>
    %128 = vector.shape_cast %127 : vector<1x16x128xf32> to vector<16x128xf32>
    %129 = arith.addf %126, %128 : vector<16x128xf32>
    %130 = vector.shape_cast %87 : vector<16x128xf32> to vector<1x16x128xf32>
    %131 = vector.shape_cast %93 : vector<16x128xf32> to vector<1x16x128xf32>
    %132 = vector.shape_cast %99 : vector<16x128xf32> to vector<1x16x128xf32>
    %133 = vector.shape_cast %105 : vector<16x128xf32> to vector<1x16x128xf32>
    %134 = vector.shape_cast %111 : vector<16x128xf32> to vector<1x16x128xf32>
    %135 = vector.shape_cast %117 : vector<16x128xf32> to vector<1x16x128xf32>
    %136 = vector.shape_cast %123 : vector<16x128xf32> to vector<1x16x128xf32>
    %137 = vector.shape_cast %129 : vector<16x128xf32> to vector<1x16x128xf32>
    %138 = tpu.concatenate %130, %131, %132, %133, %134, %135, %136, %137 in 0 : vector<1x16x128xf32>, vector<1x16x128xf32>, vector<1x16x128xf32>, vector<1x16x128xf32>, vector<1x16x128xf32>, vector<1x16x128xf32>, vector<1x16x128xf32>, vector<1x16x128xf32> -> vector<8x16x128xf32>
    %139 = vector.extract_strided_slice %61 {offsets = [1, 0], sizes = [8, 16], strides = [1, 1]} : vector<9x16xf32> to vector<8x16xf32>
    %140 = vector.shape_cast %139 : vector<8x16xf32> to vector<8x16x1xf32>
    %141 = vector.broadcast %140 : vector<8x16x1xf32> to vector<8x16x128xf32>
    %142 = arith.mulf %138, %141 : vector<8x16x128xf32>
    %cst_27 = arith.constant dense<0.000000e+00> : vector<8x128xf32>
    %143 = vector.multi_reduction <add>, %142, %cst_27 [1] : vector<8x16x128xf32> to vector<8x128xf32>
    %c0_28 = arith.constant 0 : index
    %c0_29 = arith.constant 0 : index
    %144 = vector.load %arg9[%c0_28, %c0_29] : memref<1x128xf32, #tpu.memory_space<vmem>>, vector<1x128xf32>
    %145 = vector.extract_strided_slice %43 {offsets = [1, 0], sizes = [8, 128], strides = [1, 1]} : vector<9x128xf32> to vector<8x128xf32>
    %146 = vector.broadcast %144 : vector<1x128xf32> to vector<8x128xf32>
    %147 = arith.mulf %146, %145 : vector<8x128xf32>
    %148 = arith.addf %143, %147 : vector<8x128xf32>
    %cst_30 = arith.constant 0.000000e+00 : f32
    %149 = vector.broadcast %cst_30 : f32 to vector<8x128xf32>
    %150 = arith.subf %149, %8 : vector<8x128xf32>
    %151 = math.exp %150 : vector<8x128xf32>
    %cst_31 = arith.constant 1.000000e+00 : f32
    %152 = vector.broadcast %cst_31 : f32 to vector<8x128xf32>
    %153 = arith.addf %152, %151 : vector<8x128xf32>
    %cst_32 = arith.constant 1.000000e+00 : f32
    %154 = vector.broadcast %cst_32 : f32 to vector<8x128xf32>
    %155 = arith.divf %154, %153 : vector<8x128xf32>
    %156 = arith.mulf %8, %155 : vector<8x128xf32>
    %157 = arith.mulf %148, %156 : vector<8x128xf32>
    %c0_33 = arith.constant 0 : index
    %c0_34 = arith.constant 0 : index
    %158 = vector.load %arg10[%c0_33, %c0_34] : memref<128x32xf32, #tpu.memory_space<vmem>>, vector<128x32xf32>
    %cst_35 = arith.constant dense<0.000000e+00> : vector<8x32xf32>
    %159 = tpu.matmul %157, %158, %cst_35 {dimension_numbers = #tpu.dot_dimension_numbers<[1], [0], [0], [1], [0, 0, 1, 1], [], []>} : vector<8x128xf32>, vector<128x32xf32>, vector<8x32xf32> -> vector<8x32xf32>
    %c0_36 = arith.constant 0 : index
    %c0_37 = arith.constant 0 : index
    %c0_38 = arith.constant 0 : index
    %160 = vector.load %arg11[%c0_36, %c0_37, %c0_38] : memref<1x8x32xf32, #tpu.memory_space<vmem>>, vector<1x8x32xf32>
    %161 = vector.shape_cast %160 : vector<1x8x32xf32> to vector<8x32xf32>
    %162 = vector.shape_cast %159 : vector<8x32xf32> to vector<1x8x32xf32>
    tpu.vector_store %arg11[%c0_36, %c0_37, %c0_38], %162 {strides = array<i32>} : memref<1x8x32xf32, #tpu.memory_space<vmem>>, vector<1x8x32xf32>,
    return
  }
  func.func @transform_0(%arg0: i32) -> (i32, i32, i32) {
    %c2_i32 = arith.constant 2 : i32
    %c0_i32 = arith.constant 0 : i32
    %c0_i32_0 = arith.constant 0 : i32
    %c0_i32_1 = arith.constant 0 : i32
    return %c2_i32, %c0_i32, %c0_i32_0 : i32, i32, i32
  }
  func.func @transform_1(%arg0: i32) -> (i32, i32, i32) {
    %c0_i32 = arith.constant 0 : i32
    %c0_i32_0 = arith.constant 0 : i32
    %c0_i32_1 = arith.constant 0 : i32
    %c0_i32_2 = arith.constant 0 : i32
    return %c0_i32, %c0_i32_0, %c0_i32_1 : i32, i32, i32
  }
  func.func @transform_2(%arg0: i32) -> (i32, i32) {
    %c0_i32 = arith.constant 0 : i32
    %c0_i32_0 = arith.constant 0 : i32
    %c0_i32_1 = arith.constant 0 : i32
    return %c0_i32, %c0_i32_0 : i32, i32
  }
  func.func @transform_3(%arg0: i32) -> (i32, i32) {
    %c0_i32 = arith.constant 0 : i32
    %c0_i32_0 = arith.constant 0 : i32
    %c0_i32_1 = arith.constant 0 : i32
    return %c0_i32, %c0_i32_0 : i32, i32
  }
  func.func @transform_4(%arg0: i32) -> (i32, i32) {
    %c0_i32 = arith.constant 0 : i32
    %c0_i32_0 = arith.constant 0 : i32
    %c0_i32_1 = arith.constant 0 : i32
    return %c0_i32, %c0_i32_0 : i32, i32
  }
  func.func @transform_5(%arg0: i32) -> (i32, i32) {
    %c0_i32 = arith.constant 0 : i32
    %c0_i32_0 = arith.constant 0 : i32
    %c0_i32_1 = arith.constant 0 : i32
    return %c0_i32, %c0_i32_0 : i32, i32
  }
  func.func @transform_6(%arg0: i32) -> (i32, i32) {
    %c0_i32 = arith.constant 0 : i32
    %c0_i32_0 = arith.constant 0 : i32
    %c0_i32_1 = arith.constant 0 : i32
    return %c0_i32, %c0_i32_0 : i32, i32
  }
  func.func @transform_7(%arg0: i32) -> (i32, i32) {
    %c0_i32 = arith.constant 0 : i32
    %c0_i32_0 = arith.constant 0 : i32
    %c0_i32_1 = arith.constant 0 : i32
    return %c0_i32, %c0_i32_0 : i32, i32
  }
  func.func @transform_8(%arg0: i32) -> (i32, i32) {
    %c0_i32 = arith.constant 0 : i32
    %c0_i32_0 = arith.constant 0 : i32
    %c0_i32_1 = arith.constant 0 : i32
    return %c0_i32, %c0_i32_0 : i32, i32
  }
  func.func @transform_9(%arg0: i32) -> (i32, i32) {
    %c0_i32 = arith.constant 0 : i32
    %c0_i32_0 = arith.constant 0 : i32
    %c0_i32_1 = arith.constant 0 : i32
    return %c0_i32, %c0_i32_0 : i32, i32
  }
  func.func @transform_10(%arg0: i32) -> (i32, i32, i32) {
    %c0_i32 = arith.constant 0 : i32
    %c0_i32_0 = arith.constant 0 : i32
    %c0_i32_1 = arith.constant 0 : i32
    %c0_i32_2 = arith.constant 0 : i32
    return %c0_i32, %c0_i32_0, %c0_i32_1 : i32, i32, i32
  }
}

</mosaic_0001>

<llo_original>
// kernel: tpu_custom_call.1
$region0: #{tpu_custom_call.1}
  #allocation0 [shape = 'u32[]', space=smem, size = 0x4, offset = 0x4, fixed_abs, tag = 'smem constant byte address 0x4 - core index']
  #allocation1 [shape = 'u32[144,128]{1,0:T(1,128)}', space=vmem, size = 0x12000, scoped, tag = 'internal scratch']
  %s0 = inlined_call_operand.vmem [shape: f32[4,1,32], index: 0, kind: input, shape index: {}]
  %s1 = inlined_call_operand.vmem [shape: f32[1,8,32], index: 1, kind: input, shape index: {}]
  %s2 = inlined_call_operand.vmem [shape: f32[32,256], index: 2, kind: input, shape index: {}]
  %s3 = inlined_call_operand.vmem [shape: f32[4,128], index: 3, kind: input, shape index: {}]
  %s4 = inlined_call_operand.vmem [shape: f32[1,128], index: 4, kind: input, shape index: {}]
  %s5 = inlined_call_operand.vmem [shape: f32[128,160], index: 5, kind: input, shape index: {}]
  %s6 = inlined_call_operand.vmem [shape: f32[1,128], index: 6, kind: input, shape index: {}]
  %s7 = inlined_call_operand.vmem [shape: f32[16,128], index: 7, kind: input, shape index: {}]
  %s8 = inlined_call_operand.vmem [shape: f32[1,128], index: 8, kind: input, shape index: {}]
  %s9 = inlined_call_operand.vmem [shape: f32[128,32], index: 9, kind: input, shape index: {}]
  %s10 = inlined_call_operand.hbm [shape: f32[1,8,32], index: 10, kind: output, shape index: {}]
  %s11 = sld [smem:[#allocation0]]
  $region50: #{tpu_custom_call.1} parent=0
    _
  %s13 = ssub.s32 1, %s11
  %s14 = scalar_select 0, %s13, %s11
  $region1: #{tpu_custom_call.1} parent=0
    #allocation2 [shape = 'u8[4096]{0}', space=vmem, size = 0x1000, scoped, tag = 'output window, operand 0, single buffered']
    #allocation3 [shape = 's32[1]{0}', space=sflag, size = 0x4, scoped, tag = 'scoped memory for tpu_custom_call.1']
    %15 = vsyncpa [#allocation3], 0
    // Predicated region
    $region2: #{tpu_custom_call.1} parent=1 // pred_check
      _
    $region3: #{tpu_custom_call.1} parent=1 // pred_check_branch
      %17 = sbr.rel (0) target = $region5
    $region4: #{tpu_custom_call.1} parent=1 // pred_region
      %s18 = scalar_lea.vmem %s0, 2
    $region5: #{tpu_custom_call.1} parent=1 // pred_fallthru
      _
    // Predicated region
    $region6: #{tpu_custom_call.1} parent=1 // pred_check
      _
    $region7: #{tpu_custom_call.1} parent=1 // pred_check_branch
      %20 = sbr.rel (0) target = $region9
    $region8: #{tpu_custom_call.1} parent=1 // pred_region
      _
    $region9: #{tpu_custom_call.1} parent=1 // pred_fallthru
      _
    // Predicated region
    $region10: #{tpu_custom_call.1} parent=1 // pred_check
      _
    $region11: #{tpu_custom_call.1} parent=1 // pred_check_branch
      %22 = sbr.rel (0) target = $region13
    $region12: #{tpu_custom_call.1} parent=1 // pred_region
      _
    $region13: #{tpu_custom_call.1} parent=1 // pred_fallthru
      _
    // Predicated region
    $region14: #{tpu_custom_call.1} parent=1 // pred_check
      _
    $region15: #{tpu_custom_call.1} parent=1 // pred_check_branch
      %24 = sbr.rel (0) target = $region17
    $region16: #{tpu_custom_call.1} parent=1 // pred_region
      _
    $region17: #{tpu_custom_call.1} parent=1 // pred_fallthru
      _
    // Predicated region
    $region18: #{tpu_custom_call.1} parent=1 // pred_check
      _
    $region19: #{tpu_custom_call.1} parent=1 // pred_check_branch
      %26 = sbr.rel (0) target = $region21
    $region20: #{tpu_custom_call.1} parent=1 // pred_region
      _
    $region21: #{tpu_custom_call.1} parent=1 // pred_fallthru
      _
    // Predicated region
    $region22: #{tpu_custom_call.1} parent=1 // pred_check
      _
    $region23: #{tpu_custom_call.1} parent=1 // pred_check_branch
      %28 = sbr.rel (0) target = $region25
    $region24: #{tpu_custom_call.1} parent=1 // pred_region
      _
    $region25: #{tpu_custom_call.1} parent=1 // pred_fallthru
      _
    // Predicated region
    $region26: #{tpu_custom_call.1} parent=1 // pred_check
      _
    $region27: #{tpu_custom_call.1} parent=1 // pred_check_branch
      %30 = sbr.rel (0) target = $region29
    $region28: #{tpu_custom_call.1} parent=1 // pred_region
      _
    $region29: #{tpu_custom_call.1} parent=1 // pred_fallthru
      _
    // Predicated region
    $region30: #{tpu_custom_call.1} parent=1 // pred_check
      _
    $region31: #{tpu_custom_call.1} parent=1 // pred_check_branch
      %32 = sbr.rel (0) target = $region33
    $region32: #{tpu_custom_call.1} parent=1 // pred_region
      _
    $region33: #{tpu_custom_call.1} parent=1 // pred_fallthru
      _
    // Predicated region
    $region34: #{tpu_custom_call.1} parent=1 // pred_check
      _
    $region35: #{tpu_custom_call.1} parent=1 // pred_check_branch
      %34 = sbr.rel (0) target = $region37
    $region36: #{tpu_custom_call.1} parent=1 // pred_region
      _
    $region37: #{tpu_custom_call.1} parent=1 // pred_fallthru
      _
    // Predicated region
    $region38: #{tpu_custom_call.1} parent=1 // pred_check
      _
    $region39: #{tpu_custom_call.1} parent=1 // pred_check_branch
      %36 = sbr.rel (0) target = $region41
    $region40: #{tpu_custom_call.1} parent=1 // pred_region
      _
    $region41: #{tpu_custom_call.1} parent=1 // pred_fallthru
      _
    %s37 = scalar_lea.vmem %s0, 2
    %s38 = scalar_lea.vmem %s0, 2
    %v39 = vld [vmem:[%s38] sm:$0x1]
    %v40 = vld [vmem:[%s1] sm:$0xff]
    %v42 = vrot.slane %v40, 7
    %vm44 = vcmask 1040384
    %v45 = vsel %vm44, %v39, %v42
    %v46 = vld [vmem:[%s2] sm:$0xff]
    %v47 = vld [vmem:[%s2 + $0x8] sm:$0xff]
    %v48 = vld [vmem:[%s2 + $0x10] sm:$0xff]
    %v49 = vld [vmem:[%s2 + $0x18] sm:$0xff]
    %v50 = vld [vmem:[%s2 + $0x20] sm:$0xff]
    %v51 = vld [vmem:[%s2 + $0x28] sm:$0xff]
    %v52 = vld [vmem:[%s2 + $0x30] sm:$0xff]
    %v53 = vld [vmem:[%s2 + $0x38] sm:$0xff]
    %vm54 = vcmask 261120
    %v56 = vsel %vm54, %v45, 0
    %v58 = vsel %vm54, %v42, 0
    %60 = vmatprep.subr.mxu0 0.0
    %61 = vmatpush1.msra.mxu0 0.0
    %62 = vmatprep.subr.mxu0 0.0
    %63 = vmatpush1.msra.mxu0 0.0
    %64 = vmatprep.subr.mxu0 0.0
    %65 = vmatpush1.msra.mxu0 0.0
    %66 = vmatprep.subr.mxu0 0.0
    %67 = vmatpush1.msra.mxu0 0.0
    %68 = vmatprep.subr.mxu0 0.0
    %69 = vmatpush1.msra.mxu0 0.0
    %70 = vmatprep.subr.mxu0 0.0
    %71 = vmatpush1.msra.mxu0 0.0
    %72 = vmatprep.subr.mxu0 0.0
    %73 = vmatpush1.msra.mxu0 0.0
    %74 = vmatprep.subr.mxu0 0.0
    %75 = vmatpush1.msra.mxu0 0.0
    %76 = vmatprep.subr.mxu0 0.0
    %77 = vmatpush1.msra.mxu0 0.0
    %78 = vmatprep.subr.mxu0 0.0
    %79 = vmatpush1.msra.mxu0 0.0
    %80 = vmatprep.subr.mxu0 0.0
    %81 = vmatpush1.msra.mxu0 0.0
    %82 = vmatprep.subr.mxu0 0.0
    %83 = vmatpush1.msra.mxu0 0.0
    %84 = vmatprep.subr.mxu0 %v53
    %85 = vmatpush1.msra.mxu0 %v52
    %86 = vmatprep.subr.mxu0 %v51
    %87 = vmatpush1.msra.mxu0 %v50
    %88 = vmatprep.subr.mxu0 %v49
    %89 = vmatpush1.msra.mxu0 %v48
    %90 = vmatprep.subr.mxu0 %v47
    %91 = vmatpush1.msra.mxu0 %v46
    %92 = vmatprep.subr.mxu0 0.0
    %93 = vmatpush2.msra.mxu0 0.0
    %94 = vmatprep.subr.mxu0 0.0
    %95 = vmatpush2.msra.mxu0 0.0
    %96 = vmatprep.subr.mxu0 0.0
    %97 = vmatpush2.msra.mxu0 0.0
    %98 = vmatprep.subr.mxu0 0.0
    %99 = vmatpush2.msra.mxu0 0.0
    %100 = vmatprep.subr.mxu0 0.0
    %101 = vmatpush2.msra.mxu0 0.0
    %102 = vmatprep.subr.mxu0 0.0
    %103 = vmatpush2.msra.mxu0 0.0
    %104 = vmatprep.subr.mxu0 0.0
    %105 = vmatpush2.msra.mxu0 0.0
    %106 = vmatprep.subr.mxu0 0.0
    %107 = vmatpush2.msra.mxu0 0.0
    %108 = vmatprep.subr.mxu0 0.0
    %109 = vmatpush2.msra.mxu0 0.0
    %110 = vmatprep.subr.mxu0 0.0
    %111 = vmatpush2.msra.mxu0 0.0
    %112 = vmatprep.subr.mxu0 0.0
    %113 = vmatpush2.msra.mxu0 0.0
    %114 = vmatprep.subr.mxu0 0.0
    %115 = vmatpush2.msra.mxu0 0.0
    %116 = vmatprep.subr.mxu0 0.0
    %117 = vmatpush2.msra.mxu0 0.0
    %118 = vmatprep.subr.mxu0 0.0
    %119 = vmatpush2.msra.mxu0 0.0
    %120 = vmatprep.subr.mxu0 0.0
    %121 = vmatpush2.msra.mxu0 0.0
    %122 = vmatprep.subr.mxu0 0.0
    %123 = vmatpush2.msra.mxu0 0.0
    %124 = vmatprep.mubr.f32.mxu0 0.0
    %125 = vmatmul.mubr.f32.gmra.mxu0 %v56
    %v126 = vpop.f32.mrf.mxu0
    %v127 = vadd.f32 0.0, %v126
    %v128 = vpop.f32.mrf.mxu0
    %v129 = vadd.f32 0.0, %v128
    %130 = vmatprep.mubr.f32.mxu0 0.0
    %131 = vmatmul.mubr.f32.gmra.mxu0 %v58
    %v132 = vpop.f32.mrf.mxu0
    %v133 = vadd.f32 0.0, %v132
    %v134 = vpop.f32.mrf.mxu0
    %v135 = vadd.f32 0.0, %v134
    %136 = vdwg.mxu0
    %vm139 = vcmask 1042432
    %v140 = vrot.slane %v127, 5
    %v141 = vrot.slane %v133, 5
    %v142 = vsel %vm139, %v140, %v141
    %v145 = vsel %vm139, 0.0, %v140
    %v146 = vld [vmem:[%s3] sm:$0xf]
    %v147 = vlaneseq
    %v148 = vshrl.u32 %v147, 7
    %v149 = vsub.s32 0, %v148
    %v150 = vrot.slane %v146, %v149
    %v151 = vmul.f32 %v150, %v145
    %v152 = vmul.f32 %v150, %v142
    %v153 = vadd.f32 %v151, 0.0
    %v154 = vadd.f32 %v152, 0.0
    %v155 = vlaneseq
    %v156 = vshrl.u32 %v155, 7
    %v157 = vsub.s32 1, %v156
    %v158 = vrot.slane %v146, %v157
    %v159 = vmul.f32 %v158, %v145
    %v160 = vmul.f32 %v158, %v142
    %vm163 = vcmask 1046528
    %v164 = vrot.slane %v159, 1
    %v165 = vrot.slane %v160, 1
    %v166 = vsel %vm163, %v164, %v165
    %v169 = vadd.f32 %v153, %v166
    %v170 = vadd.f32 %v154, %v165
    %v171 = vlaneseq
    %v172 = vshrl.u32 %v171, 7
    %v173 = vsub.s32 2, %v172
    %v174 = vrot.slane %v146, %v173
    %v175 = vmul.f32 %v174, %v145
    %v176 = vmul.f32 %v174, %v142
    %vm179 = vcmask 1045504
    %v180 = vrot.slane %v175, 2
    %v181 = vrot.slane %v176, 2
    %v182 = vsel %vm179, %v180, %v181
    %v185 = vadd.f32 %v169, %v182
    %v186 = vadd.f32 %v170, %v181
    %v187 = vlaneseq
    %v188 = vshrl.u32 %v187, 7
    %v189 = vsub.s32 3, %v188
    %v190 = vrot.slane %v146, %v189
    %v191 = vmul.f32 %v190, %v145
    %v192 = vmul.f32 %v190, %v142
    %vm195 = vcmask 1044480
    %v196 = vrot.slane %v191, 3
    %v197 = vrot.slane %v192, 3
    %v198 = vsel %vm195, %v196, %v197
    %v201 = vadd.f32 %v185, %v198
    %v202 = vadd.f32 %v186, %v197
    %v203 = vld [vmem:[%s4] sm:$0x1]
    %v205 = vlaneseq
    %v206 = vshrl.u32 %v205, 7
    %v207 = vsub.s32 0, %v206
    %v208 = vrot.slane %v203, %v207
    %v210 = vadd.f32 %v201, %v208
    %v211 = vadd.f32 %v202, %v208
    %v212 = vsub.f32 0.0, %v210
    %v213 = vsub.f32 0.0, %v211
    %v214 = vmul.f32 %v212, 1.442695
    %v215 = vpow.pop %v214
    %v216 = vmul.f32 %v213, 1.442695
    %v217 = vpow.pop %v216
    %v218 = vadd.f32 %v215, 1.0
    %v219 = vadd.f32 %v217, 1.0
    %v220 = vrcp.pop %v218
    %v221 = vmul.f32 1.0, %v220
    %v222 = vrcp.pop %v219
    %v223 = vmul.f32 1.0, %v222
    %v224 = vmul.f32 %v210, %v221
    %v225 = vmul.f32 %v211, %v223
    %v226 = vld [vmem:[%s5] sm:$0xff]
    %v227 = vld [vmem:[%s5 + $0x8] sm:$0xff]
    %v228 = vld [vmem:[%s5 + $0x10] sm:$0xff]
    %v229 = vld [vmem:[%s5 + $0x18] sm:$0xff]
    %v230 = vld [vmem:[%s5 + $0x20] sm:$0xff]
    %v231 = vld [vmem:[%s5 + $0x28] sm:$0xff]
    %v232 = vld [vmem:[%s5 + $0x30] sm:$0xff]
    %v233 = vld [vmem:[%s5 + $0x38] sm:$0xff]
    %v234 = vld [vmem:[%s5 + $0x40] sm:$0xff]
    %v235 = vld [vmem:[%s5 + $0x48] sm:$0xff]
    %v236 = vld [vmem:[%s5 + $0x50] sm:$0xff]
    %v237 = vld [vmem:[%s5 + $0x58] sm:$0xff]
    %v238 = vld [vmem:[%s5 + $0x60] sm:$0xff]
    %v239 = vld [vmem:[%s5 + $0x68] sm:$0xff]
    %v240 = vld [vmem:[%s5 + $0x70] sm:$0xff]
    %v241 = vld [vmem:[%s5 + $0x78] sm:$0xff]
    %v242 = vld [vmem:[%s5 + $0x80] sm:$0xff]
    %v243 = vld [vmem:[%s5 + $0x88] sm:$0xff]
    %v244 = vld [vmem:[%s5 + $0x90] sm:$0xff]
    %v245 = vld [vmem:[%s5 + $0x98] sm:$0xff]
    %v246 = vld [vmem:[%s5 + $0xa0] sm:$0xff]
    %v247 = vld [vmem:[%s5 + $0xa8] sm:$0xff]
    %v248 = vld [vmem:[%s5 + $0xb0] sm:$0xff]
    %v249 = vld [vmem:[%s5 + $0xb8] sm:$0xff]
    %v250 = vld [vmem:[%s5 + $0xc0] sm:$0xff]
    %v251 = vld [vmem:[%s5 + $0xc8] sm:$0xff]
    %v252 = vld [vmem:[%s5 + $0xd0] sm:$0xff]
    %v253 = vld [vmem:[%s5 + $0xd8] sm:$0xff]
    %v254 = vld [vmem:[%s5 + $0xe0] sm:$0xff]
    %v255 = vld [vmem:[%s5 + $0xe8] sm:$0xff]
    %v256 = vld [vmem:[%s5 + $0xf0] sm:$0xff]
    %v257 = vld [vmem:[%s5 + $0xf8] sm:$0xff]
    %258 = vmatprep.subr.mxu0 %v257
    %259 = vmatpush1.msra.mxu0 %v256
    %260 = vmatprep.subr.mxu0 %v255
    %261 = vmatpush1.msra.mxu0 %v254
    %262 = vmatprep.subr.mxu0 %v253
    %263 = vmatpush1.msra.mxu0 %v252
    %264 = vmatprep.subr.mxu0 %v251
    %265 = vmatpush1.msra.mxu0 %v250
    %266 = vmatprep.subr.mxu0 %v249
    %267 = vmatpush1.msra.mxu0 %v248
    %268 = vmatprep.subr.mxu0 %v247
    %269 = vmatpush1.msra.mxu0 %v246
    %270 = vmatprep.subr.mxu0 %v245
    %271 = vmatpush1.msra.mxu0 %v244
    %272 = vmatprep.subr.mxu0 %v243
    %273 = vmatpush1.msra.mxu0 %v242
    %274 = vmatprep.subr.mxu0 %v241
    %275 = vmatpush1.msra.mxu0 %v240
    %276 = vmatprep.subr.mxu0 %v239
    %277 = vmatpush1.msra.mxu0 %v238
    %278 = vmatprep.subr.mxu0 %v237
    %279 = vmatpush1.msra.mxu0 %v236
    %280 = vmatprep.subr.mxu0 %v235
    %281 = vmatpush1.msra.mxu0 %v234
    %282 = vmatprep.subr.mxu0 %v233
    %283 = vmatpush1.msra.mxu0 %v232
    %284 = vmatprep.subr.mxu0 %v231
    %285 = vmatpush1.msra.mxu0 %v230
    %286 = vmatprep.subr.mxu0 %v229
    %287 = vmatpush1.msra.mxu0 %v228
    %288 = vmatprep.subr.mxu0 %v227
    %289 = vmatpush1.msra.mxu0 %v226
    %290 = vmatprep.subr.mxu0 0.0
    %291 = vmatpush2.msra.mxu0 0.0
    %292 = vmatprep.subr.mxu0 0.0
    %293 = vmatpush2.msra.mxu0 0.0
    %294 = vmatprep.subr.mxu0 0.0
    %295 = vmatpush2.msra.mxu0 0.0
    %296 = vmatprep.subr.mxu0 0.0
    %297 = vmatpush2.msra.mxu0 0.0
    %298 = vmatprep.subr.mxu0 0.0
    %299 = vmatpush2.msra.mxu0 0.0
    %300 = vmatprep.subr.mxu0 0.0
    %301 = vmatpush2.msra.mxu0 0.0
    %302 = vmatprep.subr.mxu0 0.0
    %303 = vmatpush2.msra.mxu0 0.0
    %304 = vmatprep.subr.mxu0 0.0
    %305 = vmatpush2.msra.mxu0 0.0
    %306 = vmatprep.subr.mxu0 0.0
    %307 = vmatpush2.msra.mxu0 0.0
    %308 = vmatprep.subr.mxu0 0.0
    %309 = vmatpush2.msra.mxu0 0.0
    %310 = vmatprep.subr.mxu0 0.0
    %311 = vmatpush2.msra.mxu0 0.0
    %312 = vmatprep.subr.mxu0 0.0
    %313 = vmatpush2.msra.mxu0 0.0
    %314 = vmatprep.subr.mxu0 0.0
    %315 = vmatpush2.msra.mxu0 0.0
    %316 = vmatprep.subr.mxu0 0.0
    %317 = vmatpush2.msra.mxu0 0.0
    %318 = vmatprep.subr.mxu0 0.0
    %319 = vmatpush2.msra.mxu0 0.0
    %320 = vmatprep.subr.mxu0 0.0
    %321 = vmatpush2.msra.mxu0 0.0
    %322 = vmatprep.mubr.f32.mxu0 0.0
    %323 = vmatmul.mubr.f32.gmra.mxu0 %v224
    %v324 = vpop.f32.mrf.mxu0
    %v325 = vadd.f32 0.0, %v324
    %v326 = vpop.f32.mrf.mxu0
    %v327 = vadd.f32 0.0, %v326
    %328 = vmatprep.mubr.f32.mxu0 0.0
    %329 = vmatmul.mubr.f32.gmra.mxu0 %v225
    %v330 = vpop.f32.mrf.mxu0
    %v331 = vadd.f32 0.0, %v330
    %v332 = vpop.f32.mrf.mxu0
    %v333 = vadd.f32 0.0, %v332
    %334 = vdwg.mxu0
    %v335 = vld [vmem:[%s6] sm:$0x1]
    %v337 = vlaneseq
    %v338 = vshrl.u32 %v337, 7
    %v339 = vsub.s32 0, %v338
    %v340 = vrot.slane %v335, %v339
    %v342 = vadd.f32 %v325, %v340
    %v343 = vadd.f32 %v331, %v340
    %v344 = vmax.f32 %v342, 0.0
    %v345 = vmax.f32 %v343, 0.0
    %v346 = vand.u32 2147483647, %v342
    %v347 = vand.u32 2147483647, %v343
    %v348 = vsub.f32 0.0, %v346
    %v349 = vsub.f32 0.0, %v347
    %v350 = vmul.f32 %v348, 1.442695
    %v351 = vpow.pop %v350
    %v352 = vmul.f32 %v349, 1.442695
    %v353 = vpow.pop %v352
    %v354 = vadd.f32 %v351, 1.0
    %v355 = vadd.f32 %v353, 1.0
    %v356 = vlog2.pop %v354
    %v357 = vmul.f32 %v356, 0.6931472
    %v358 = vlog2.pop %v355
    %v359 = vmul.f32 %v358, 0.6931472
    %v360 = vadd.f32 %v344, %v357
    %v361 = vadd.f32 %v345, %v359
    %v362 = vld [vmem:[%s7] sm:$0xff]
    %v363 = vld [vmem:[%s7 + $0x8] sm:$0xff]
    %v364 = vmul.f32 %v360, %v224
    %v365 = vmul.f32 %v361, %v225
    %v368 = vcombine.high %v360, %v360
    %v370 = vunpack.c.l.s4 1966171168
    %v371 = vunpack.c.0.s8 %v370
    %v372 = vlaneseq
    %v373 = vshrl.u32 %v372, 7
    %v374 = vsub.s32 %v371, %v373
    %v375 = vrot.slane %v360, %v374
    %v377 = vunpack.c.l.s4 1966171168
    %v378 = vunpack.c.0.s8 %v377
    %v379 = vlaneseq
    %v380 = vshrl.u32 %v379, 7
    %v381 = vsub.s32 %v378, %v380
    %v382 = vrot.slane %v368, %v381
    %v383 = vcombine.high %v375, %v375
    %v384 = vcombine.high %v382, %v382
    %v386 = vunpack.c.l.s4 1966171168
    %v387 = vunpack.c.0.s8 %v386
    %v388 = vlaneseq
    %v389 = vshrl.u32 %v388, 7
    %v390 = vsub.s32 %v387, %v389
    %v391 = vrot.slane %v375, %v390
    %v393 = vunpack.c.l.s4 1966171168
    %v394 = vunpack.c.0.s8 %v393
    %v395 = vlaneseq
    %v396 = vshrl.u32 %v395, 7
    %v397 = vsub.s32 %v394, %v396
    %v398 = vrot.slane %v382, %v397
    %v400 = vunpack.c.l.s4 1966171168
    %v401 = vunpack.c.0.s8 %v400
    %v402 = vlaneseq
    %v403 = vshrl.u32 %v402, 7
    %v404 = vsub.s32 %v401, %v403
    %v405 = vrot.slane %v383, %v404
    %v407 = vunpack.c.l.s4 1966171168
    %v408 = vunpack.c.0.s8 %v407
    %v409 = vlaneseq
    %v410 = vshrl.u32 %v409, 7
    %v411 = vsub.s32 %v408, %v410
    %v412 = vrot.slane %v384, %v411
    %v413 = vcombine.high %v391, %v391
    %v414 = vcombine.high %v398, %v398
    %v415 = vcombine.high %v405, %v405
    %v416 = vcombine.high %v412, %v412
    %v418 = vunpack.c.l.s4 1966171168
    %v419 = vunpack.c.0.s8 %v418
    %v420 = vlaneseq
    %v421 = vshrl.u32 %v420, 7
    %v422 = vsub.s32 %v419, %v421
    %v423 = vrot.slane %v361, %v422
    %v425 = vunpack.c.l.s4 1966171168
    %v426 = vunpack.c.0.s8 %v425
    %v427 = vlaneseq
    %v428 = vshrl.u32 %v427, 7
    %v429 = vsub.s32 %v426, %v428
    %v430 = vrot.slane %v423, %v429
    %v431 = vlaneseq
    %v432 = vshrl.u32 %v431, 7
    %v433 = vsub.s32 0, %v432
    %v434 = vrot.slane %v391, %v433
    %v435 = vlaneseq
    %v436 = vshrl.u32 %v435, 7
    %v437 = vsub.s32 0, %v436
    %v438 = vrot.slane %v405, %v437
    %v439 = vlaneseq
    %v440 = vshrl.u32 %v439, 7
    %v441 = vsub.s32 0, %v440
    %v442 = vrot.slane %v413, %v441
    %v443 = vlaneseq
    %v444 = vshrl.u32 %v443, 7
    %v445 = vsub.s32 0, %v444
    %v446 = vrot.slane %v415, %v445
    %v447 = vlaneseq
    %v448 = vshrl.u32 %v447, 7
    %v449 = vsub.s32 0, %v448
    %v450 = vrot.slane %v398, %v449
    %v451 = vlaneseq
    %v452 = vshrl.u32 %v451, 7
    %v453 = vsub.s32 0, %v452
    %v454 = vrot.slane %v412, %v453
    %v455 = vlaneseq
    %v456 = vshrl.u32 %v455, 7
    %v457 = vsub.s32 0, %v456
    %v458 = vrot.slane %v414, %v457
    %v459 = vlaneseq
    %v460 = vshrl.u32 %v459, 7
    %v461 = vsub.s32 0, %v460
    %v462 = vrot.slane %v416, %v461
    %v463 = vlaneseq
    %v464 = vshrl.u32 %v463, 7
    %v465 = vsub.s32 0, %v464
    %v466 = vrot.slane %v430, %v465
    %v476 = vmul.f32 %v434, %v362
    %v477 = vmul.f32 %v434, %v363
    %v478 = vmul.f32 %v438, %v362
    %v479 = vmul.f32 %v438, %v363
    %v480 = vmul.f32 %v442, %v362
    %v481 = vmul.f32 %v442, %v363
    %v482 = vmul.f32 %v446, %v362
    %v483 = vmul.f32 %v446, %v363
    %v484 = vmul.f32 %v450, %v362
    %v485 = vmul.f32 %v450, %v363
    %v486 = vmul.f32 %v454, %v362
    %v487 = vmul.f32 %v454, %v363
    %v488 = vmul.f32 %v458, %v362
    %v489 = vmul.f32 %v458, %v363
    %v490 = vmul.f32 %v462, %v362
    %v491 = vmul.f32 %v462, %v363
    %v492 = vmul.f32 %v466, %v362
    %v493 = vmul.f32 %v466, %v363
    %v494 = vmul.f32 %v476, 1.442695
    %v495 = vpow.pop %v494
    %v496 = vmul.f32 %v477, 1.442695
    %v497 = vpow.pop %v496
    %v498 = vmul.f32 %v478, 1.442695
    %v499 = vpow.pop %v498
    %v500 = vmul.f32 %v479, 1.442695
    %v501 = vpow.pop %v500
    %v502 = vmul.f32 %v480, 1.442695
    %v503 = vpow.pop %v502
    %v504 = vmul.f32 %v481, 1.442695
    %v505 = vpow.pop %v504
    %v506 = vmul.f32 %v482, 1.442695
    %v507 = vpow.pop %v506
    %v508 = vmul.f32 %v483, 1.442695
    %v509 = vpow.pop %v508
    %v510 = vmul.f32 %v484, 1.442695
    %v511 = vpow.pop %v510
    %v512 = vmul.f32 %v485, 1.442695
    %v513 = vpow.pop %v512
    %v514 = vmul.f32 %v486, 1.442695
    %v515 = vpow.pop %v514
    %v516 = vmul.f32 %v487, 1.442695
    %v517 = vpow.pop %v516
    %v518 = vmul.f32 %v488, 1.442695
    %v519 = vpow.pop %v518
    %v520 = vmul.f32 %v489, 1.442695
    %v521 = vpow.pop %v520
    %v522 = vmul.f32 %v490, 1.442695
    %v523 = vpow.pop %v522
    %v524 = vmul.f32 %v491, 1.442695
    %v525 = vpow.pop %v524
    %v526 = vmul.f32 %v492, 1.442695
    %v527 = vpow.pop %v526
    %v528 = vmul.f32 %v493, 1.442695
    %v529 = vpow.pop %v528
    %v530 = vlaneseq
    %v531 = vshrl.u32 %v530, 7
    %v532 = vsub.s32 0, %v531
    %v533 = vrot.slane %v327, %v532
    %535 = vbcast.lane.b32.xlu0 %v533, 256
    %v536 = vpop.permute.xlu0 %535
    %s538 = sor.u32 256, 8
    %539 = vbcast.lane.b32.xlu0 %v533, %s538
    %v540 = vpop.permute.xlu0 %539
    %v541 = vlaneseq
    %v542 = vshrl.u32 %v541, 7
    %v543 = vsub.s32 1, %v542
    %v544 = vrot.slane %v327, %v543
    %546 = vbcast.lane.b32.xlu0 %v544, 256
    %v547 = vpop.permute.xlu0 %546
    %s549 = sor.u32 256, 8
    %550 = vbcast.lane.b32.xlu0 %v544, %s549
    %v551 = vpop.permute.xlu0 %550
    %v552 = vlaneseq
    %v553 = vshrl.u32 %v552, 7
    %v554 = vsub.s32 2, %v553
    %v555 = vrot.slane %v327, %v554
    %557 = vbcast.lane.b32.xlu0 %v555, 256
    %v558 = vpop.permute.xlu0 %557
    %s560 = sor.u32 256, 8
    %561 = vbcast.lane.b32.xlu0 %v555, %s560
    %v562 = vpop.permute.xlu0 %561
    %v563 = vlaneseq
    %v564 = vshrl.u32 %v563, 7
    %v565 = vsub.s32 3, %v564
    %v566 = vrot.slane %v327, %v565
    %568 = vbcast.lane.b32.xlu0 %v566, 256
    %v569 = vpop.permute.xlu0 %568
    %s571 = sor.u32 256, 8
    %572 = vbcast.lane.b32.xlu0 %v566, %s571
    %v573 = vpop.permute.xlu0 %572
    %v574 = vlaneseq
    %v575 = vshrl.u32 %v574, 7
    %v576 = vsub.s32 4, %v575
    %v577 = vrot.slane %v327, %v576
    %579 = vbcast.lane.b32.xlu0 %v577, 256
    %v580 = vpop.permute.xlu0 %579
    %s582 = sor.u32 256, 8
    %583 = vbcast.lane.b32.xlu0 %v577, %s582
    %v584 = vpop.permute.xlu0 %583
    %v585 = vlaneseq
    %v586 = vshrl.u32 %v585, 7
    %v587 = vsub.s32 5, %v586
    %v588 = vrot.slane %v327, %v587
    %590 = vbcast.lane.b32.xlu0 %v588, 256
    %v591 = vpop.permute.xlu0 %590
    %s593 = sor.u32 256, 8
    %594 = vbcast.lane.b32.xlu0 %v588, %s593
    %v595 = vpop.permute.xlu0 %594
    %v596 = vlaneseq
    %v597 = vshrl.u32 %v596, 7
    %v598 = vsub.s32 6, %v597
    %v599 = vrot.slane %v327, %v598
    %601 = vbcast.lane.b32.xlu0 %v599, 256
    %v602 = vpop.permute.xlu0 %601
    %s604 = sor.u32 256, 8
    %605 = vbcast.lane.b32.xlu0 %v599, %s604
    %v606 = vpop.permute.xlu0 %605
    %v607 = vlaneseq
    %v608 = vshrl.u32 %v607, 7
    %v609 = vsub.s32 7, %v608
    %v610 = vrot.slane %v327, %v609
    %612 = vbcast.lane.b32.xlu0 %v610, 256
    %v613 = vpop.permute.xlu0 %612
    %s615 = sor.u32 256, 8
    %616 = vbcast.lane.b32.xlu0 %v610, %s615
    %v617 = vpop.permute.xlu0 %616
    %v618 = vlaneseq
    %v619 = vshrl.u32 %v618, 7
    %v620 = vsub.s32 0, %v619
    %v621 = vrot.slane %v333, %v620
    %623 = vbcast.lane.b32.xlu0 %v621, 256
    %v624 = vpop.permute.xlu0 %623
    %s626 = sor.u32 256, 8
    %627 = vbcast.lane.b32.xlu0 %v621, %s626
    %v628 = vpop.permute.xlu0 %627
    %v631 = vcombine.high %v364, %v364
    %v633 = vunpack.c.l.s4 1966171168
    %v634 = vunpack.c.0.s8 %v633
    %v635 = vlaneseq
    %v636 = vshrl.u32 %v635, 7
    %v637 = vsub.s32 %v634, %v636
    %v638 = vrot.slane %v364, %v637
    %v640 = vunpack.c.l.s4 1966171168
    %v641 = vunpack.c.0.s8 %v640
    %v642 = vlaneseq
    %v643 = vshrl.u32 %v642, 7
    %v644 = vsub.s32 %v641, %v643
    %v645 = vrot.slane %v631, %v644
    %v646 = vcombine.high %v638, %v638
    %v647 = vcombine.high %v645, %v645
    %v649 = vunpack.c.l.s4 1966171168
    %v650 = vunpack.c.0.s8 %v649
    %v651 = vlaneseq
    %v652 = vshrl.u32 %v651, 7
    %v653 = vsub.s32 %v650, %v652
    %v654 = vrot.slane %v638, %v653
    %v656 = vunpack.c.l.s4 1966171168
    %v657 = vunpack.c.0.s8 %v656
    %v658 = vlaneseq
    %v659 = vshrl.u32 %v658, 7
    %v660 = vsub.s32 %v657, %v659
    %v661 = vrot.slane %v645, %v660
    %v663 = vunpack.c.l.s4 1966171168
    %v664 = vunpack.c.0.s8 %v663
    %v665 = vlaneseq
    %v666 = vshrl.u32 %v665, 7
    %v667 = vsub.s32 %v664, %v666
    %v668 = vrot.slane %v646, %v667
    %v670 = vunpack.c.l.s4 1966171168
    %v671 = vunpack.c.0.s8 %v670
    %v672 = vlaneseq
    %v673 = vshrl.u32 %v672, 7
    %v674 = vsub.s32 %v671, %v673
    %v675 = vrot.slane %v647, %v674
    %v676 = vcombine.high %v654, %v654
    %v677 = vcombine.high %v661, %v661
    %v678 = vcombine.high %v668, %v668
    %v679 = vcombine.high %v675, %v675
    %v681 = vunpack.c.l.s4 1966171168
    %v682 = vunpack.c.0.s8 %v681
    %v683 = vlaneseq
    %v684 = vshrl.u32 %v683, 7
    %v685 = vsub.s32 %v682, %v684
    %v686 = vrot.slane %v365, %v685
    %v688 = vunpack.c.l.s4 1966171168
    %v689 = vunpack.c.0.s8 %v688
    %v690 = vlaneseq
    %v691 = vshrl.u32 %v690, 7
    %v692 = vsub.s32 %v689, %v691
    %v693 = vrot.slane %v686, %v692
    %v694 = vlaneseq
    %v695 = vshrl.u32 %v694, 7
    %v696 = vsub.s32 0, %v695
    %v697 = vrot.slane %v654, %v696
    %v698 = vlaneseq
    %v699 = vshrl.u32 %v698, 7
    %v700 = vsub.s32 0, %v699
    %v701 = vrot.slane %v668, %v700
    %v702 = vlaneseq
    %v703 = vshrl.u32 %v702, 7
    %v704 = vsub.s32 0, %v703
    %v705 = vrot.slane %v676, %v704
    %v706 = vlaneseq
    %v707 = vshrl.u32 %v706, 7
    %v708 = vsub.s32 0, %v707
    %v709 = vrot.slane %v678, %v708
    %v710 = vlaneseq
    %v711 = vshrl.u32 %v710, 7
    %v712 = vsub.s32 0, %v711
    %v713 = vrot.slane %v661, %v712
    %v714 = vlaneseq
    %v715 = vshrl.u32 %v714, 7
    %v716 = vsub.s32 0, %v715
    %v717 = vrot.slane %v675, %v716
    %v718 = vlaneseq
    %v719 = vshrl.u32 %v718, 7
    %v720 = vsub.s32 0, %v719
    %v721 = vrot.slane %v677, %v720
    %v722 = vlaneseq
    %v723 = vshrl.u32 %v722, 7
    %v724 = vsub.s32 0, %v723
    %v725 = vrot.slane %v679, %v724
    %v726 = vlaneseq
    %v727 = vshrl.u32 %v726, 7
    %v728 = vsub.s32 0, %v727
    %v729 = vrot.slane %v693, %v728
    %v739 = vmul.f32 %v536, %v697
    %v740 = vmul.f32 %v540, %v697
    %v741 = vmul.f32 %v547, %v701
    %v742 = vmul.f32 %v551, %v701
    %v743 = vmul.f32 %v558, %v705
    %v744 = vmul.f32 %v562, %v705
    %v745 = vmul.f32 %v569, %v709
    %v746 = vmul.f32 %v573, %v709
    %v747 = vmul.f32 %v580, %v713
    %v748 = vmul.f32 %v584, %v713
    %v749 = vmul.f32 %v591, %v717
    %v750 = vmul.f32 %v595, %v717
    %v751 = vmul.f32 %v602, %v721
    %v752 = vmul.f32 %v606, %v721
    %v753 = vmul.f32 %v613, %v725
    %v754 = vmul.f32 %v617, %v725
    %v755 = vmul.f32 %v624, %v729
    %v756 = vmul.f32 %v628, %v729
    %v757 = vmul.f32 %v495, 0.0
    %v758 = vmul.f32 %v497, 0.0
    %v759 = vadd.f32 %v757, %v739
    %v760 = vadd.f32 %v758, %v740
    %v761 = vmul.f32 %v499, %v759
    %v762 = vmul.f32 %v501, %v760
    %v763 = vadd.f32 %v761, %v741
    %v764 = vadd.f32 %v762, %v742
    %v765 = vmul.f32 %v503, %v763
    %v766 = vmul.f32 %v505, %v764
    %v767 = vadd.f32 %v765, %v743
    %v768 = vadd.f32 %v766, %v744
    %v769 = vmul.f32 %v507, %v767
    %v770 = vmul.f32 %v509, %v768
    %v771 = vadd.f32 %v769, %v745
    %v772 = vadd.f32 %v770, %v746
    %v773 = vmul.f32 %v511, %v771
    %v774 = vmul.f32 %v513, %v772
    %v775 = vadd.f32 %v773, %v747
    %v776 = vadd.f32 %v774, %v748
    %v777 = vmul.f32 %v515, %v775
    %v778 = vmul.f32 %v517, %v776
    %v779 = vadd.f32 %v777, %v749
    %v780 = vadd.f32 %v778, %v750
    %v781 = vmul.f32 %v519, %v779
    %v782 = vmul.f32 %v521, %v780
    %v783 = vadd.f32 %v781, %v751
    %v784 = vadd.f32 %v782, %v752
    %v785 = vmul.f32 %v523, %v783
    %v786 = vmul.f32 %v525, %v784
    %v787 = vadd.f32 %v785, %v753
    %v788 = vadd.f32 %v786, %v754
    %v789 = vmul.f32 %v527, %v787
    %v790 = vmul.f32 %v529, %v788
    %v791 = vadd.f32 %v789, %v755
    %v792 = vadd.f32 %v790, %v756
    %s794 = sor.u32 256, 16
    %795 = vbcast.lane.b32.xlu0 %v544, %s794
    %v796 = vpop.permute.xlu0 %795
    %s798 = sor.u32 256, 24
    %799 = vbcast.lane.b32.xlu0 %v544, %s798
    %v800 = vpop.permute.xlu0 %799
    %s802 = sor.u32 256, 16
    %803 = vbcast.lane.b32.xlu0 %v555, %s802
    %v804 = vpop.permute.xlu0 %803
    %s806 = sor.u32 256, 24
    %807 = vbcast.lane.b32.xlu0 %v555, %s806
    %v808 = vpop.permute.xlu0 %807
    %s810 = sor.u32 256, 16
    %811 = vbcast.lane.b32.xlu0 %v566, %s810
    %v812 = vpop.permute.xlu0 %811
    %s814 = sor.u32 256, 24
    %815 = vbcast.lane.b32.xlu0 %v566, %s814
    %v816 = vpop.permute.xlu0 %815
    %s818 = sor.u32 256, 16
    %819 = vbcast.lane.b32.xlu0 %v577, %s818
    %v820 = vpop.permute.xlu0 %819
    %s822 = sor.u32 256, 24
    %823 = vbcast.lane.b32.xlu0 %v577, %s822
    %v824 = vpop.permute.xlu0 %823
    %s826 = sor.u32 256, 16
    %827 = vbcast.lane.b32.xlu0 %v588, %s826
    %v828 = vpop.permute.xlu0 %827
    %s830 = sor.u32 256, 24
    %831 = vbcast.lane.b32.xlu0 %v588, %s830
    %v832 = vpop.permute.xlu0 %831
    %s834 = sor.u32 256, 16
    %835 = vbcast.lane.b32.xlu0 %v599, %s834
    %v836 = vpop.permute.xlu0 %835
    %s838 = sor.u32 256, 24
    %839 = vbcast.lane.b32.xlu0 %v599, %s838
    %v840 = vpop.permute.xlu0 %839
    %s842 = sor.u32 256, 16
    %843 = vbcast.lane.b32.xlu0 %v610, %s842
    %v844 = vpop.permute.xlu0 %843
    %s846 = sor.u32 256, 24
    %847 = vbcast.lane.b32.xlu0 %v610, %s846
    %v848 = vpop.permute.xlu0 %847
    %s850 = sor.u32 256, 16
    %851 = vbcast.lane.b32.xlu0 %v621, %s850
    %v852 = vpop.permute.xlu0 %851
    %s854 = sor.u32 256, 24
    %855 = vbcast.lane.b32.xlu0 %v621, %s854
    %v856 = vpop.permute.xlu0 %855
    %v857 = vmul.f32 %v763, %v796
    %v858 = vmul.f32 %v764, %v800
    %v859 = vmul.f32 %v767, %v804
    %v860 = vmul.f32 %v768, %v808
    %v861 = vmul.f32 %v771, %v812
    %v862 = vmul.f32 %v772, %v816
    %v863 = vmul.f32 %v775, %v820
    %v864 = vmul.f32 %v776, %v824
    %v865 = vmul.f32 %v779, %v828
    %v866 = vmul.f32 %v780, %v832
    %v867 = vmul.f32 %v783, %v836
    %v868 = vmul.f32 %v784, %v840
    %v869 = vmul.f32 %v787, %v844
    %v870 = vmul.f32 %v788, %v848
    %v871 = vmul.f32 %v791, %v852
    %v872 = vmul.f32 %v792, %v856
    %v873 = vadd.f32 %v857, %v858
    %v874 = vrot.slane %v873, 4
    %v875 = vadd.f32 %v873, %v874
    %v876 = vrot.slane %v875, 2
    %v877 = vadd.f32 %v875, %v876
    %v878 = vrot.slane %v877, 1
    %v879 = vadd.f32 %v877, %v878
    %v880 = vadd.f32 %v859, %v860
    %v881 = vrot.slane %v880, 4
    %v882 = vadd.f32 %v880, %v881
    %v883 = vrot.slane %v882, 2
    %v884 = vadd.f32 %v882, %v883
    %v885 = vrot.slane %v884, 1
    %v886 = vadd.f32 %v884, %v885
    %v887 = vadd.f32 %v861, %v862
    %v888 = vrot.slane %v887, 4
    %v889 = vadd.f32 %v887, %v888
    %v890 = vrot.slane %v889, 2
    %v891 = vadd.f32 %v889, %v890
    %v892 = vrot.slane %v891, 1
    %v893 = vadd.f32 %v891, %v892
    %v894 = vadd.f32 %v863, %v864
    %v895 = vrot.slane %v894, 4
    %v896 = vadd.f32 %v894, %v895
    %v897 = vrot.slane %v896, 2
    %v898 = vadd.f32 %v896, %v897
    %v899 = vrot.slane %v898, 1
    %v900 = vadd.f32 %v898, %v899
    %v901 = vadd.f32 %v865, %v866
    %v902 = vrot.slane %v901, 4
    %v903 = vadd.f32 %v901, %v902
    %v904 = vrot.slane %v903, 2
    %v905 = vadd.f32 %v903, %v904
    %v906 = vrot.slane %v905, 1
    %v907 = vadd.f32 %v905, %v906
    %v908 = vadd.f32 %v867, %v868
    %v909 = vrot.slane %v908, 4
    %v910 = vadd.f32 %v908, %v909
    %v911 = vrot.slane %v910, 2
    %v912 = vadd.f32 %v910, %v911
    %v913 = vrot.slane %v912, 1
    %v914 = vadd.f32 %v912, %v913
    %v915 = vadd.f32 %v869, %v870
    %v916 = vrot.slane %v915, 4
    %v917 = vadd.f32 %v915, %v916
    %v918 = vrot.slane %v917, 2
    %v919 = vadd.f32 %v917, %v918
    %v920 = vrot.slane %v919, 1
    %v921 = vadd.f32 %v919, %v920
    %v922 = vadd.f32 %v871, %v872
    %v923 = vrot.slane %v922, 4
    %v924 = vadd.f32 %v922, %v923
    %v925 = vrot.slane %v924, 2
    %v926 = vadd.f32 %v924, %v925
    %v927 = vrot.slane %v926, 1
    %v928 = vadd.f32 %v926, %v927
    %v929 = vld [vmem:[%s8] sm:$0x1]
    %v931 = vlaneseq
    %v932 = vshrl.u32 %v931, 7
    %v933 = vsub.s32 0, %v932
    %v934 = vrot.slane %v929, %v933
    %v936 = vmul.f32 %v934, %v224
    %v937 = vmul.f32 %v934, %v225
    %v940 = vrot.slane %v936, 1
    %v941 = vrot.slane %v936, 2
    %v942 = vrot.slane %v936, 3
    %v943 = vrot.slane %v936, 4
    %v944 = vrot.slane %v936, 5
    %v945 = vrot.slane %v936, 6
    %v946 = vrot.slane %v936, 7
    %v955 = vadd.f32 %v879, %v940
    %v956 = vadd.f32 %v886, %v941
    %v957 = vadd.f32 %v893, %v942
    %v958 = vadd.f32 %v900, %v943
    %v959 = vadd.f32 %v907, %v944
    %v960 = vadd.f32 %v914, %v945
    %v961 = vadd.f32 %v921, %v946
    %v962 = vadd.f32 %v928, %v937
    %v963 = vsub.f32 0.0, %v129
    %v964 = vsub.f32 0.0, %v135
    %v965 = vmul.f32 %v963, 1.442695
    %v966 = vpow.pop %v965
    %v967 = vmul.f32 %v964, 1.442695
    %v968 = vpow.pop %v967
    %v969 = vadd.f32 %v966, 1.0
    %v970 = vadd.f32 %v968, 1.0
    %v971 = vrcp.pop %v969
    %v972 = vmul.f32 1.0, %v971
    %v973 = vrcp.pop %v970
    %v974 = vmul.f32 1.0, %v973
    %v975 = vmul.f32 %v129, %v972
    %v976 = vmul.f32 %v135, %v974
    %v979 = vrot.slane %v975, 1
    %v980 = vrot.slane %v975, 2
    %v981 = vrot.slane %v975, 3
    %v982 = vrot.slane %v975, 4
    %v983 = vrot.slane %v975, 5
    %v984 = vrot.slane %v975, 6
    %v985 = vrot.slane %v975, 7
    %v994 = vmul.f32 %v955, %v979
    %v995 = vmul.f32 %v956, %v980
    %v996 = vmul.f32 %v957, %v981
    %v997 = vmul.f32 %v958, %v982
    %v998 = vmul.f32 %v959, %v983
    %v999 = vmul.f32 %v960, %v984
    %v1000 = vmul.f32 %v961, %v985
    %v1001 = vmul.f32 %v962, %v976
    %v1002 = vld [vmem:[%s9] sm:$0xff]
    %v1003 = vld [vmem:[%s9 + $0x8] sm:$0xff]
    %v1004 = vld [vmem:[%s9 + $0x10] sm:$0xff]
    %v1005 = vld [vmem:[%s9 + $0x18] sm:$0xff]
    %v1006 = vld [vmem:[%s9 + $0x20] sm:$0xff]
    %v1007 = vld [vmem:[%s9 + $0x28] sm:$0xff]
    %v1008 = vld [vmem:[%s9 + $0x30] sm:$0xff]
    %v1009 = vld [vmem:[%s9 + $0x38] sm:$0xff]
    %v1010 = vld [vmem:[%s9 + $0x40] sm:$0xff]
    %v1011 = vld [vmem:[%s9 + $0x48] sm:$0xff]
    %v1012 = vld [vmem:[%s9 + $0x50] sm:$0xff]
    %v1013 = vld [vmem:[%s9 + $0x58] sm:$0xff]
    %v1014 = vld [vmem:[%s9 + $0x60] sm:$0xff]
    %v1015 = vld [vmem:[%s9 + $0x68] sm:$0xff]
    %v1016 = vld [vmem:[%s9 + $0x70] sm:$0xff]
    %v1017 = vld [vmem:[%s9 + $0x78] sm:$0xff]
    %v1026 = vrot.slane %v995, 7
    %vm1027 = vcmask 1041409
    %v1028 = vsel %vm1027, %v1026, %v994
    %v1029 = vrot.slane %v996, 6
    %vm1030 = vcmask 1042434
    %v1031 = vsel %vm1030, %v1029, %v1028
    %v1032 = vrot.slane %v997, 5
    %vm1033 = vcmask 1043459
    %v1034 = vsel %vm1033, %v1032, %v1031
    %v1035 = vrot.slane %v998, 4
    %vm1036 = vcmask 1044484
    %v1037 = vsel %vm1036, %v1035, %v1034
    %v1038 = vrot.slane %v999, 3
    %vm1039 = vcmask 1045509
    %v1040 = vsel %vm1039, %v1038, %v1037
    %v1041 = vrot.slane %v1000, 2
    %vm1042 = vcmask 1046534
    %v1043 = vsel %vm1042, %v1041, %v1040
    %v1044 = vrot.slane %v1001, 1
    %vm1045 = vcmask 1047559
    %v1046 = vsel %vm1045, %v1044, %v1043
    %1048 = vmatprep.subr.mxu0 0.0
    %1049 = vmatpush1.msra.mxu0 %v1017
    %1050 = vmatprep.subr.mxu0 0.0
    %1051 = vmatpush1.msra.mxu0 %v1016
    %1052 = vmatprep.subr.mxu0 0.0
    %1053 = vmatpush1.msra.mxu0 %v1015
    %1054 = vmatprep.subr.mxu0 0.0
    %1055 = vmatpush1.msra.mxu0 %v1014
    %1056 = vmatprep.subr.mxu0 0.0
    %1057 = vmatpush1.msra.mxu0 %v1013
    %1058 = vmatprep.subr.mxu0 0.0
    %1059 = vmatpush1.msra.mxu0 %v1012
    %1060 = vmatprep.subr.mxu0 0.0
    %1061 = vmatpush1.msra.mxu0 %v1011
    %1062 = vmatprep.subr.mxu0 0.0
    %1063 = vmatpush1.msra.mxu0 %v1010
    %1064 = vmatprep.subr.mxu0 0.0
    %1065 = vmatpush1.msra.mxu0 %v1009
    %1066 = vmatprep.subr.mxu0 0.0
    %1067 = vmatpush1.msra.mxu0 %v1008
    %1068 = vmatprep.subr.mxu0 0.0
    %1069 = vmatpush1.msra.mxu0 %v1007
    %1070 = vmatprep.subr.mxu0 0.0
    %1071 = vmatpush1.msra.mxu0 %v1006
    %1072 = vmatprep.subr.mxu0 0.0
    %1073 = vmatpush1.msra.mxu0 %v1005
    %1074 = vmatprep.subr.mxu0 0.0
    %1075 = vmatpush1.msra.mxu0 %v1004
    %1076 = vmatprep.subr.mxu0 0.0
    %1077 = vmatpush1.msra.mxu0 %v1003
    %1078 = vmatprep.subr.mxu0 0.0
    %1079 = vmatpush1.msra.mxu0 %v1002
    %1080 = vmatprep.subr.mxu0 0.0
    %1081 = vmatpush2.msra.mxu0 0.0
    %1082 = vmatprep.subr.mxu0 0.0
    %1083 = vmatpush2.msra.mxu0 0.0
    %1084 = vmatprep.subr.mxu0 0.0
    %1085 = vmatpush2.msra.mxu0 0.0
    %1086 = vmatprep.subr.mxu0 0.0
    %1087 = vmatpush2.msra.mxu0 0.0
    %1088 = vmatprep.subr.mxu0 0.0
    %1089 = vmatpush2.msra.mxu0 0.0
    %1090 = vmatprep.subr.mxu0 0.0
    %1091 = vmatpush2.msra.mxu0 0.0
    %1092 = vmatprep.subr.mxu0 0.0
    %1093 = vmatpush2.msra.mxu0 0.0
    %1094 = vmatprep.subr.mxu0 0.0
    %1095 = vmatpush2.msra.mxu0 0.0
    %1096 = vmatprep.subr.mxu0 0.0
    %1097 = vmatpush2.msra.mxu0 0.0
    %1098 = vmatprep.subr.mxu0 0.0
    %1099 = vmatpush2.msra.mxu0 0.0
    %1100 = vmatprep.subr.mxu0 0.0
    %1101 = vmatpush2.msra.mxu0 0.0
    %1102 = vmatprep.subr.mxu0 0.0
    %1103 = vmatpush2.msra.mxu0 0.0
    %1104 = vmatprep.subr.mxu0 0.0
    %1105 = vmatpush2.msra.mxu0 0.0
    %1106 = vmatprep.subr.mxu0 0.0
    %1107 = vmatpush2.msra.mxu0 0.0
    %1108 = vmatprep.subr.mxu0 0.0
    %1109 = vmatpush2.msra.mxu0 0.0
    %1110 = vmatprep.subr.mxu0 0.0
    %1111 = vmatpush2.msra.mxu0 0.0
    %1112 = vmatprep.mubr.f32.mxu0 0.0
    %1113 = vmatmul.mubr.f32.gmra.mxu0 %v1046
    %v1114 = vpop.f32.mrf.mxu0
    %v1115 = vadd.f32 0.0, %v1114
    %v1116 = vpop.f32.mrf.mxu0
    %1117 = vdwg.mxu0
    %1118 = vst.msk [vmem:[#allocation2] sm:$0xff] %vm54, %v1115
    // Predicated region
    $region42: #{tpu_custom_call.1} parent=1 // pred_check
      _
    $region43: #{tpu_custom_call.1} parent=1 // pred_check_branch
      %1120 = sbr.rel (0) target = $region45
    $region44: #{tpu_custom_call.1} parent=1 // pred_region
      %s1122 = ssub.s32 128, 128
      %1123 = vsyncadd [#allocation3], %s1122
      %s1125 = sshll.u32 [#allocation2], 4
      %s1126 = int_to_ptr.vmem [resolvable:$true] %s1125
      %1128 = dma.vmem_to_hbm [thread:$0]  %s1126, 128, %s10, [#allocation3]
    $region45: #{tpu_custom_call.1} parent=1 // pred_fallthru
      _
    // Predicated region
    $region46: #{tpu_custom_call.1} parent=1 // pred_check
      _
    $region47: #{tpu_custom_call.1} parent=1 // pred_check_branch
      %1130 = sbr.rel (0) target = $region49
    $region48: #{tpu_custom_call.1} parent=1 // pred_region
      %1131 = dma.done [#allocation3], 128
    $region49: #{tpu_custom_call.1} parent=1 // pred_fallthru
      _
    %1132 = vsyncpa [#allocation3], 1

</llo_original>
